<compile_context>
chip_gen: v5e
topology: v5e:2x2
jax: 0.10.0
libtpu: 0.0.40
codegen_flags: <defaults>
</compile_context>

<pallas_src>
import jax
import jax.numpy as jnp
from jax.experimental import pallas as pl
from jax.experimental.pallas import tpu as pltpu

LANES = 128  # TPU lane width (last-dim vreg width)


def _round_up(n, m):
    return ((n + m - 1) // m) * m


def _slab_layout(state_size):
    """Static row offsets of the packed parameter slab."""
    sp = _round_up(state_size, 8)   # rows holding fc1 weight (sublane-aligned)
    w2_lo = sp                      # fc2 weight padded to a full 128-row block
    b1_row = sp + LANES
    b2_row = b1_row + 1
    w3_row = b1_row + 2
    n_rows = _round_up(w3_row + 1, 8)
    return sp, w2_lo, b1_row, b2_row, w3_row, n_rows


def _make_kernel(sp, w2_lo, b1_row, b2_row, w3_row):
    def critic_kernel(x_ref, p_ref, o_ref):
        x = x_ref[...]                              # (TM, SP)   zero-padded input
        w1 = p_ref[0:sp, :]                         # (SP, 128)  fc1 weight (padded)
        w2 = p_ref[w2_lo:w2_lo + LANES, :]          # (128, 128) fc2 weight (padded)
        b1 = p_ref[b1_row:b1_row + 1, :]            # (1, 128)
        b2 = p_ref[b2_row:b2_row + 1, :]            # (1, 128)  (lane h2dim == 1.0)
        w3 = p_ref[w3_row:w3_row + 1, :]            # (1, 128)  (lane h2dim == b3)

        # fc1 + relu (MXU, small K = SP). Padded lanes stay exactly 0 after relu.
        h1 = jnp.maximum(
            jnp.dot(x, w1, preferred_element_type=jnp.float32,
                    precision=jax.lax.Precision.HIGHEST) + b1, 0.0)
        # fc2 + relu (MXU, full 128x128). Lane `h2dim` becomes relu(0 + 1) == 1,
        # which carries the fc3 bias through the lane reduction below.
        h2 = jnp.maximum(
            jnp.dot(h1, w2, preferred_element_type=jnp.float32,
                    precision=jax.lax.Precision.HIGHEST) + b2, 0.0)
        # fc3 (value head) on the VPU + XLU: broadcast multiply + lane reduce.
        # sum(h2 * w3row) == h2[:, :h2dim] @ w3 + 1 * b3 (all other lanes are 0).
        v = jnp.sum(h2 * w3, axis=-1, keepdims=True)   # (TM, 1)
        o_ref[...] = v.astype(o_ref.dtype)

    return critic_kernel


def pack_params(w1, b1, w2, b2, w3, b3):
    """Pack all parameters into one zero-padded (n_rows, 128) f32 slab.

    Do this ONCE at init time in a real setup; it is ordinary jnp code.
    """
    state_size, hidden = w1.shape
    h2dim = w2.shape[1]
    assert w2.shape[0] == hidden and w3.shape == (h2dim, 1)
    assert hidden <= LANES and h2dim < LANES, (
        "hidden dims must fit in a single 128-lane vreg for this packing")

    sp, w2_lo, b1_row, b2_row, w3_row, n_rows = _slab_layout(state_size)
    p = jnp.zeros((n_rows, LANES), jnp.float32)
    p = p.at[0:state_size, 0:hidden].set(w1.astype(jnp.float32))
    p = p.at[w2_lo:w2_lo + hidden, 0:h2dim].set(w2.astype(jnp.float32))
    p = p.at[b1_row, 0:hidden].set(b1.reshape(-1).astype(jnp.float32))
    p = p.at[b2_row, 0:h2dim].set(b2.reshape(-1).astype(jnp.float32))
    p = p.at[b2_row, h2dim].set(1.0)                               # bias-fold "1"
    p = p.at[w3_row, 0:h2dim].set(w3.reshape(-1).astype(jnp.float32))
    p = p.at[w3_row, h2dim].set(b3.reshape(()).astype(jnp.float32))  # b3
    return p


def critic_forward_packed(x, packed_params, *, tm_max=512):
    batch, state_size = x.shape
    sp, w2_lo, b1_row, b2_row, w3_row, n_rows = _slab_layout(state_size)
    assert packed_params.shape == (n_rows, LANES), (
        packed_params.shape, (n_rows, LANES))

    # Batch tile: multiple of 8 (sublane), capped at tm_max; pad batch so the
    # grid divides evenly (padded rows are computed then dropped).
    tm = min(tm_max, _round_up(batch, 8))
    b_pad = _round_up(batch, tm)
    # Input kept at its natural (sublane-rounded) feature width -> tiny DMA.
    x_pad = jnp.zeros((b_pad, sp), jnp.float32).at[
        :batch, :state_size].set(x.astype(jnp.float32))

    kernel = _make_kernel(sp, w2_lo, b1_row, b2_row, w3_row)
    out = pl.pallas_call(
        kernel,
        out_shape=jax.ShapeDtypeStruct((b_pad, 1), jnp.float32),
        grid=(b_pad // tm,),
        in_specs=[
            # x: tiled over batch -> double-buffered load overlaps compute.
            pl.BlockSpec((tm, sp), lambda i: (i, 0),
                         memory_space=pltpu.VMEM),
            # packed params: one block, same index every step -> single DMA,
            # stays VMEM-resident across the whole grid.
            pl.BlockSpec((n_rows, LANES), lambda i: (0, 0),
                         memory_space=pltpu.VMEM),
        ],
        out_specs=pl.BlockSpec((tm, 1), lambda i: (i, 0),
                               memory_space=pltpu.VMEM),
        compiler_params=pltpu.CompilerParams(
            dimension_semantics=("parallel",)),   # shards across v7x's 2 TCs
    )(x_pad, packed_params)
    return out[:batch]


def critic_forward(x, w1, b1, w2, b2, w3, b3):
    """Convenience wrapper: pack + run (pack once at init in real use)."""
    return critic_forward_packed(x, pack_params(w1, b1, w2, b2, w3, b3))


def init_params(key, state_size, hidden_layer):
    """Deterministic init mimicking PyTorch's default Linear init
    (uniform(-1/sqrt(fan_in), 1/sqrt(fan_in))). Weights stored as (in, out)."""
    h2 = hidden_layer // 2
    dims = [(state_size, hidden_layer), (hidden_layer, h2), (h2, 1)]
    params = []
    for (fan_in, fan_out) in dims:
        key, kw, kb = jax.random.split(key, 3)
        bound = 1.0 / jnp.sqrt(fan_in)
        w = jax.random.uniform(kw, (fan_in, fan_out), jnp.float32, -bound, bound)
        b = jax.random.uniform(kb, (1, fan_out), jnp.float32, -bound, bound)
        params += [w, b]
    return params


if __name__ == "__main__":
    # LunarLander-v2 continuous: state_size=8, action_size=2 (unused in forward).
    state_size = 8
    hidden_layer = 32
    batch = 4

    key = jax.random.PRNGKey(0)
    key, kx = jax.random.split(key)
    x = jax.random.normal(kx, (batch, state_size), jnp.float32)

    w1, b1, w2, b2, w3, b3 = init_params(key, state_size, hidden_layer)

    out = critic_forward(x, w1, b1, w2, b2, w3, b3)
    out = jax.block_until_ready(out)

    # Pure-JAX reference check of the same forward pass.
    ref = jnp.maximum(x @ w1 + b1, 0.0)
    ref = jnp.maximum(ref @ w2 + b2, 0.0)
    ref = ref @ w3 + b3
    assert out.shape == (batch, 1)
    assert jnp.allclose(out, ref, atol=1e-5, rtol=1e-5), (out, ref)

    # TODO(synk): optim.Adam / nn.MSELoss are training-side and intentionally
    # not part of this forward-pass kernel.
    print("KERNEL_OK")
</pallas_src>

<mosaic_0001>
module attributes {stable_mosaic.version = 11 : i64} {
  func.func @critic_kernel(%arg0: i32, %arg1: memref<8x8xf32, #tpu.memory_space<vmem>>, %arg2: memref<144x128xf32, #tpu.memory_space<vmem>>, %arg3: memref<8x1xf32, #tpu.memory_space<vmem>>) attributes {dimension_semantics = [#tpu.dimension_semantics<parallel>], iteration_bounds = array<i64: 1>, scalar_prefetch = 0 : i64, scratch_operands = 0 : i64, tpu.core_type = #tpu.core_type<tc>, window_params = [{transform_indices = @transform_0, window_bounds = array<i64: 8, 8>}, {pipeline_mode = #tpu.pipeline_mode<synchronous>, transform_indices = @transform_1, window_bounds = array<i64: 144, 128>}, {transform_indices = @transform_2, window_bounds = array<i64: 8, 1>}]} {
    %c0 = arith.constant 0 : index
    %c0_0 = arith.constant 0 : index
    %0 = vector.load %arg1[%c0, %c0_0] : memref<8x8xf32, #tpu.memory_space<vmem>>, vector<8x8xf32>
    %c0_1 = arith.constant 0 : index
    %c0_2 = arith.constant 0 : index
    %1 = vector.load %arg2[%c0_1, %c0_2] : memref<144x128xf32, #tpu.memory_space<vmem>>, vector<8x128xf32>
    %c8 = arith.constant 8 : index
    %c0_3 = arith.constant 0 : index
    %2 = vector.load %arg2[%c8, %c0_3] : memref<144x128xf32, #tpu.memory_space<vmem>>, vector<128x128xf32>
    %c136 = arith.constant 136 : index
    %c0_4 = arith.constant 0 : index
    %3 = vector.load %arg2[%c136, %c0_4] : memref<144x128xf32, #tpu.memory_space<vmem>>, vector<1x128xf32>
    %c137 = arith.constant 137 : index
    %c0_5 = arith.constant 0 : index
    %4 = vector.load %arg2[%c137, %c0_5] : memref<144x128xf32, #tpu.memory_space<vmem>>, vector<1x128xf32>
    %c138 = arith.constant 138 : index
    %c0_6 = arith.constant 0 : index
    %5 = vector.load %arg2[%c138, %c0_6] : memref<144x128xf32, #tpu.memory_space<vmem>>, vector<1x128xf32>
    %cst = arith.constant dense<0.000000e+00> : vector<8x128xf32>
    %6 = tpu.matmul %0, %1, %cst {dimension_numbers = #tpu.dot_dimension_numbers<[1], [0], [0], [1], [0, 0, 1, 1], [], []>, precision = #tpu.contract_precision<fp32>} : vector<8x8xf32>, vector<8x128xf32>, vector<8x128xf32> -> vector<8x128xf32>
    %7 = vector.broadcast %3 : vector<1x128xf32> to vector<8x128xf32>
    %8 = arith.addf %6, %7 : vector<8x128xf32>
    %cst_7 = arith.constant 0.000000e+00 : f32
    %9 = vector.broadcast %cst_7 : f32 to vector<8x128xf32>
    %10 = arith.maximumf %8, %9 : vector<8x128xf32>
    %cst_8 = arith.constant dense<0.000000e+00> : vector<8x128xf32>
    %11 = tpu.matmul %10, %2, %cst_8 {dimension_numbers = #tpu.dot_dimension_numbers<[1], [0], [0], [1], [0, 0, 1, 1], [], []>, precision = #tpu.contract_precision<fp32>} : vector<8x128xf32>, vector<128x128xf32>, vector<8x128xf32> -> vector<8x128xf32>
    %12 = vector.broadcast %4 : vector<1x128xf32> to vector<8x128xf32>
    %13 = arith.addf %11, %12 : vector<8x128xf32>
    %cst_9 = arith.constant 0.000000e+00 : f32
    %14 = vector.broadcast %cst_9 : f32 to vector<8x128xf32>
    %15 = arith.maximumf %13, %14 : vector<8x128xf32>
    %16 = vector.broadcast %5 : vector<1x128xf32> to vector<8x128xf32>
    %17 = arith.mulf %15, %16 : vector<8x128xf32>
    %cst_10 = arith.constant dense<0.000000e+00> : vector<8xf32>
    %18 = vector.multi_reduction <add>, %17, %cst_10 [1] : vector<8x128xf32> to vector<8xf32>
    %19 = vector.shape_cast %18 : vector<8xf32> to vector<8x1xf32>
    %c0_11 = arith.constant 0 : index
    %c0_12 = arith.constant 0 : index
    %20 = vector.load %arg3[%c0_11, %c0_12] : memref<8x1xf32, #tpu.memory_space<vmem>>, vector<8x1xf32>
    tpu.vector_store %arg3[%c0_11, %c0_12], %19 {strides = array<i32>} : memref<8x1xf32, #tpu.memory_space<vmem>>, vector<8x1xf32>,
    return
  }
  func.func @transform_0(%arg0: i32) -> (i32, i32) {
    %c0_i32 = arith.constant 0 : i32
    %c0_i32_0 = arith.constant 0 : i32
    return %arg0, %c0_i32 : i32, i32
  }
  func.func @transform_1(%arg0: i32) -> (i32, i32) {
    %c0_i32 = arith.constant 0 : i32
    %c0_i32_0 = arith.constant 0 : i32
    %c0_i32_1 = arith.constant 0 : i32
    return %c0_i32, %c0_i32_0 : i32, i32
  }
  func.func @transform_2(%arg0: i32) -> (i32, i32) {
    %c0_i32 = arith.constant 0 : i32
    %c0_i32_0 = arith.constant 0 : i32
    return %arg0, %c0_i32 : i32, i32
  }
}

</mosaic_0001>

<llo_original>
// kernel: tpu_custom_call.1
$region0: #{tpu_custom_call.1}
  #allocation0 [shape = 'u32[]', space=smem, size = 0x4, offset = 0x4, fixed_abs, tag = 'smem constant byte address 0x4 - core index']
  #allocation1 [shape = 'u32[72,128]{1,0:T(1,128)}', space=vmem, size = 0x9000, scoped, tag = 'internal scratch']
  %s0 = inlined_call_operand.hbm [shape: f32[8,8], index: 0, kind: input, shape index: {}]
  %s1 = inlined_call_operand.hbm [shape: f32[144,128], index: 1, kind: input, shape index: {}]
  %s2 = inlined_call_operand.vmem [shape: f32[8,1], index: 2, kind: output, shape index: {}]
  %s3 = sld [smem:[#allocation0]]
  $region26: #{tpu_custom_call.1} parent=0
    _
  %s5 = ssub.s32 1, %s3
  %s6 = scalar_select 0, %s5, %s3
  $region1: #{tpu_custom_call.1} parent=0
    #allocation2 [shape = 'u8[4096]{0}', space=vmem, size = 0x1000, scoped, tag = 'input window, operand 0, single buffered']
    #allocation3 [shape = 's32[1]{0}', space=sflag, size = 0x4, scoped, tag = 'scoped memory for tpu_custom_call.1']
    #allocation4 [shape = 'u8[73728]{0}', space=vmem, size = 0x12000, scoped, tag = 'input window, operand 1, single buffered']
    #allocation5 [shape = 's32[1]{0}', space=sflag, size = 0x4, scoped, tag = 'scoped memory for tpu_custom_call.1']
    %7 = vsyncpa [#allocation3], 0
    %8 = vsyncpa [#allocation5], 0
    // Predicated region
    $region2: #{tpu_custom_call.1} parent=1 // pred_check
      _
    $region3: #{tpu_custom_call.1} parent=1 // pred_check_branch
      %10 = sbr.rel (0) target = $region5
    $region4: #{tpu_custom_call.1} parent=1 // pred_region
      %12 = vsyncadd [#allocation3], 0
      %s14 = sshll.u32 %s0, 4
      %s15 = int_to_ptr.hbm [resolvable:$true] %s14
      %s16 = sshll.u32 [#allocation2], 4
      %s17 = int_to_ptr.vmem [resolvable:$true] %s16
      %19 = dma.hbm_to_vmem [thread:$0]  %s15, 128, %s17, [#allocation3]
    $region5: #{tpu_custom_call.1} parent=1 // pred_fallthru
      _
    // Predicated region
    $region6: #{tpu_custom_call.1} parent=1 // pred_check
      _
    $region7: #{tpu_custom_call.1} parent=1 // pred_check_branch
      %21 = sbr.rel (0) target = $region9
    $region8: #{tpu_custom_call.1} parent=1 // pred_region
      %23 = vsyncadd [#allocation5], 0
      %s24 = sshll.u32 %s1, 4
      %s25 = int_to_ptr.hbm [resolvable:$true] %s24
      %s26 = sshll.u32 [#allocation4], 4
      %s27 = int_to_ptr.vmem [resolvable:$true] %s26
      %32 = dma.hbm_to_vmem [thread:$0]  %s25, 2304, %s27, [#allocation5], 128, 128, 8
    $region9: #{tpu_custom_call.1} parent=1 // pred_fallthru
      _
    // Predicated region
    $region10: #{tpu_custom_call.1} parent=1 // pred_check
      _
    $region11: #{tpu_custom_call.1} parent=1 // pred_check_branch
      %34 = sbr.rel (0) target = $region13
    $region12: #{tpu_custom_call.1} parent=1 // pred_region
      %36 = dma.done [#allocation3], 128
    $region13: #{tpu_custom_call.1} parent=1 // pred_fallthru
      _
    // Predicated region
    $region14: #{tpu_custom_call.1} parent=1 // pred_check
      _
    $region15: #{tpu_custom_call.1} parent=1 // pred_check_branch
      %38 = sbr.rel (0) target = $region17
    $region16: #{tpu_custom_call.1} parent=1 // pred_region
      %40 = dma.done [#allocation5], 2304
    $region17: #{tpu_custom_call.1} parent=1 // pred_fallthru
      _
    %v41 = vld [vmem:[#allocation2] sm:$0xff]
    %v42 = vld [vmem:[#allocation4] sm:$0xff]
    %v43 = vld [vmem:[#allocation4 + $0x8] sm:$0xff]
    %v44 = vld [vmem:[#allocation4 + $0x10] sm:$0xff]
    %v45 = vld [vmem:[#allocation4 + $0x18] sm:$0xff]
    %v46 = vld [vmem:[#allocation4 + $0x20] sm:$0xff]
    %v47 = vld [vmem:[#allocation4 + $0x28] sm:$0xff]
    %v48 = vld [vmem:[#allocation4 + $0x30] sm:$0xff]
    %v49 = vld [vmem:[#allocation4 + $0x38] sm:$0xff]
    %v50 = vld [vmem:[#allocation4 + $0x40] sm:$0xff]
    %v51 = vld [vmem:[#allocation4 + $0x48] sm:$0xff]
    %v52 = vld [vmem:[#allocation4 + $0x50] sm:$0xff]
    %v53 = vld [vmem:[#allocation4 + $0x58] sm:$0xff]
    %v54 = vld [vmem:[#allocation4 + $0x60] sm:$0xff]
    %v55 = vld [vmem:[#allocation4 + $0x68] sm:$0xff]
    %v56 = vld [vmem:[#allocation4 + $0x70] sm:$0xff]
    %v57 = vld [vmem:[#allocation4 + $0x78] sm:$0xff]
    %v58 = vld [vmem:[#allocation4 + $0x80] sm:$0xff]
    %v59 = vld [vmem:[#allocation4 + $0x88] sm:$0x1]
    %v60 = vld [vmem:[#allocation4 + $0x89] sm:$0x1]
    %v61 = vld [vmem:[#allocation4 + $0x8a] sm:$0x1]
    %v62 = vperm.slane %v59, 0
    %vm63 = vcmask 64512
    %v65 = vsel %vm63, %v41, 0
    %67 = vmatpush.msra.mxu0 0.0
    %68 = vmatpush.msra.mxu0 0.0
    %69 = vmatpush.msra.mxu0 0.0
    %70 = vmatpush.msra.mxu0 0.0
    %71 = vmatpush.msra.mxu0 0.0
    %72 = vmatpush.msra.mxu0 0.0
    %73 = vmatpush.msra.mxu0 0.0
    %74 = vmatpush.msra.mxu0 0.0
    %75 = vmatpush.msra.mxu0 0.0
    %76 = vmatpush.msra.mxu0 0.0
    %77 = vmatpush.msra.mxu0 0.0
    %78 = vmatpush.msra.mxu0 0.0
    %79 = vmatpush.msra.mxu0 0.0
    %80 = vmatpush.msra.mxu0 0.0
    %81 = vmatpush.msra.mxu0 0.0
    %v82 = vand.u32 %v42, 4294901760
    %83 = vmatpush.msra.mxu0 %v82
    %v84 = vand.u32 %v65, 4294901760
    %v85 = vsub.f32 %v65, %v84
    %v86 = vand.u32 %v85, 4294901760
    %v87 = vsub.f32 %v85, %v86
    %v88 = vand.u32 %v87, 4294901760
    %89 = vmatmul.f32.gmra.mxu0 %v88
    %v90 = vpop.f32.mrf.mxu0
    %v91 = vadd.f32 %v62, %v90
    %92 = vdwg.mxu0
    %93 = vmatpush.msra.mxu0 0.0
    %94 = vmatpush.msra.mxu0 0.0
    %95 = vmatpush.msra.mxu0 0.0
    %96 = vmatpush.msra.mxu0 0.0
    %97 = vmatpush.msra.mxu0 0.0
    %98 = vmatpush.msra.mxu0 0.0
    %99 = vmatpush.msra.mxu0 0.0
    %100 = vmatpush.msra.mxu0 0.0
    %101 = vmatpush.msra.mxu0 0.0
    %102 = vmatpush.msra.mxu0 0.0
    %103 = vmatpush.msra.mxu0 0.0
    %104 = vmatpush.msra.mxu0 0.0
    %105 = vmatpush.msra.mxu0 0.0
    %106 = vmatpush.msra.mxu0 0.0
    %107 = vmatpush.msra.mxu0 0.0
    %v108 = vand.u32 %v42, 4294901760
    %v109 = vsub.f32 %v42, %v108
    %v110 = vand.u32 %v109, 4294901760
    %v111 = vsub.f32 %v109, %v110
    %v112 = vand.u32 %v111, 4294901760
    %113 = vmatpush.msra.mxu0 %v112
    %v114 = vand.u32 %v65, 4294901760
    %115 = vmatmul.f32.gmra.mxu0 %v114
    %v116 = vpop.f32.mrf.mxu0
    %v117 = vadd.f32 %v91, %v116
    %118 = vdwg.mxu0
    %119 = vmatpush.msra.mxu0 0.0
    %120 = vmatpush.msra.mxu0 0.0
    %121 = vmatpush.msra.mxu0 0.0
    %122 = vmatpush.msra.mxu0 0.0
    %123 = vmatpush.msra.mxu0 0.0
    %124 = vmatpush.msra.mxu0 0.0
    %125 = vmatpush.msra.mxu0 0.0
    %126 = vmatpush.msra.mxu0 0.0
    %127 = vmatpush.msra.mxu0 0.0
    %128 = vmatpush.msra.mxu0 0.0
    %129 = vmatpush.msra.mxu0 0.0
    %130 = vmatpush.msra.mxu0 0.0
    %131 = vmatpush.msra.mxu0 0.0
    %132 = vmatpush.msra.mxu0 0.0
    %133 = vmatpush.msra.mxu0 0.0
    %v134 = vand.u32 %v42, 4294901760
    %v135 = vsub.f32 %v42, %v134
    %136 = vmatpush.msra.mxu0 %v135
    %v137 = vand.u32 %v65, 4294901760
    %v138 = vsub.f32 %v65, %v137
    %139 = vmatmul.f32.gmra.mxu0 %v138
    %v140 = vpop.f32.mrf.mxu0
    %v141 = vadd.f32 %v117, %v140
    %142 = vdwg.mxu0
    %143 = vmatpush.msra.mxu0 0.0
    %144 = vmatpush.msra.mxu0 0.0
    %145 = vmatpush.msra.mxu0 0.0
    %146 = vmatpush.msra.mxu0 0.0
    %147 = vmatpush.msra.mxu0 0.0
    %148 = vmatpush.msra.mxu0 0.0
    %149 = vmatpush.msra.mxu0 0.0
    %150 = vmatpush.msra.mxu0 0.0
    %151 = vmatpush.msra.mxu0 0.0
    %152 = vmatpush.msra.mxu0 0.0
    %153 = vmatpush.msra.mxu0 0.0
    %154 = vmatpush.msra.mxu0 0.0
    %155 = vmatpush.msra.mxu0 0.0
    %156 = vmatpush.msra.mxu0 0.0
    %157 = vmatpush.msra.mxu0 0.0
    %v158 = vand.u32 %v42, 4294901760
    %159 = vmatpush.msra.mxu0 %v158
    %v160 = vand.u32 %v65, 4294901760
    %v161 = vsub.f32 %v65, %v160
    %v162 = vand.u32 %v161, 4294901760
    %163 = vmatmul.f32.gmra.mxu0 %v162
    %v164 = vpop.f32.mrf.mxu0
    %v165 = vadd.f32 %v141, %v164
    %166 = vdwg.mxu0
    %167 = vmatpush.msra.mxu0 0.0
    %168 = vmatpush.msra.mxu0 0.0
    %169 = vmatpush.msra.mxu0 0.0
    %170 = vmatpush.msra.mxu0 0.0
    %171 = vmatpush.msra.mxu0 0.0
    %172 = vmatpush.msra.mxu0 0.0
    %173 = vmatpush.msra.mxu0 0.0
    %174 = vmatpush.msra.mxu0 0.0
    %175 = vmatpush.msra.mxu0 0.0
    %176 = vmatpush.msra.mxu0 0.0
    %177 = vmatpush.msra.mxu0 0.0
    %178 = vmatpush.msra.mxu0 0.0
    %179 = vmatpush.msra.mxu0 0.0
    %180 = vmatpush.msra.mxu0 0.0
    %181 = vmatpush.msra.mxu0 0.0
    %v182 = vand.u32 %v42, 4294901760
    %v183 = vsub.f32 %v42, %v182
    %v184 = vand.u32 %v183, 4294901760
    %185 = vmatpush.msra.mxu0 %v184
    %v186 = vand.u32 %v65, 4294901760
    %187 = vmatmul.f32.gmra.mxu0 %v186
    %v188 = vpop.f32.mrf.mxu0
    %v189 = vadd.f32 %v165, %v188
    %190 = vdwg.mxu0
    %191 = vmatpush.msra.mxu0 0.0
    %192 = vmatpush.msra.mxu0 0.0
    %193 = vmatpush.msra.mxu0 0.0
    %194 = vmatpush.msra.mxu0 0.0
    %195 = vmatpush.msra.mxu0 0.0
    %196 = vmatpush.msra.mxu0 0.0
    %197 = vmatpush.msra.mxu0 0.0
    %198 = vmatpush.msra.mxu0 0.0
    %199 = vmatpush.msra.mxu0 0.0
    %200 = vmatpush.msra.mxu0 0.0
    %201 = vmatpush.msra.mxu0 0.0
    %202 = vmatpush.msra.mxu0 0.0
    %203 = vmatpush.msra.mxu0 0.0
    %204 = vmatpush.msra.mxu0 0.0
    %205 = vmatpush.msra.mxu0 0.0
    %v206 = vand.u32 %v42, 4294901760
    %207 = vmatpush.msra.mxu0 %v206
    %v208 = vand.u32 %v65, 4294901760
    %209 = vmatmul.f32.gmra.mxu0 %v208
    %v210 = vpop.f32.mrf.mxu0
    %v211 = vadd.f32 %v189, %v210
    %212 = vdwg.mxu0
    %v213 = vmax.f32 %v211, 0.0
    %v214 = vperm.slane %v60, 0
    %v215 = vand.u32 %v58, 4294901760
    %216 = vmatpush.msra.mxu0 %v215
    %v217 = vand.u32 %v57, 4294901760
    %218 = vmatpush.msra.mxu0 %v217
    %v219 = vand.u32 %v56, 4294901760
    %220 = vmatpush.msra.mxu0 %v219
    %v221 = vand.u32 %v55, 4294901760
    %222 = vmatpush.msra.mxu0 %v221
    %v223 = vand.u32 %v54, 4294901760
    %224 = vmatpush.msra.mxu0 %v223
    %v225 = vand.u32 %v53, 4294901760
    %226 = vmatpush.msra.mxu0 %v225
    %v227 = vand.u32 %v52, 4294901760
    %228 = vmatpush.msra.mxu0 %v227
    %v229 = vand.u32 %v51, 4294901760
    %230 = vmatpush.msra.mxu0 %v229
    %v231 = vand.u32 %v50, 4294901760
    %232 = vmatpush.msra.mxu0 %v231
    %v233 = vand.u32 %v49, 4294901760
    %234 = vmatpush.msra.mxu0 %v233
    %v235 = vand.u32 %v48, 4294901760
    %236 = vmatpush.msra.mxu0 %v235
    %v237 = vand.u32 %v47, 4294901760
    %238 = vmatpush.msra.mxu0 %v237
    %v239 = vand.u32 %v46, 4294901760
    %240 = vmatpush.msra.mxu0 %v239
    %v241 = vand.u32 %v45, 4294901760
    %242 = vmatpush.msra.mxu0 %v241
    %v243 = vand.u32 %v44, 4294901760
    %244 = vmatpush.msra.mxu0 %v243
    %v245 = vand.u32 %v43, 4294901760
    %246 = vmatpush.msra.mxu0 %v245
    %v247 = vand.u32 %v213, 4294901760
    %v248 = vsub.f32 %v213, %v247
    %v249 = vand.u32 %v248, 4294901760
    %v250 = vsub.f32 %v248, %v249
    %v251 = vand.u32 %v250, 4294901760
    %252 = vmatmul.f32.gmra.mxu0 %v251
    %v253 = vpop.f32.mrf.mxu0
    %v254 = vadd.f32 %v214, %v253
    %255 = vdwg.mxu0
    %v256 = vand.u32 %v58, 4294901760
    %v257 = vsub.f32 %v58, %v256
    %v258 = vand.u32 %v257, 4294901760
    %v259 = vsub.f32 %v257, %v258
    %v260 = vand.u32 %v259, 4294901760
    %261 = vmatpush.msra.mxu0 %v260
    %v262 = vand.u32 %v57, 4294901760
    %v263 = vsub.f32 %v57, %v262
    %v264 = vand.u32 %v263, 4294901760
    %v265 = vsub.f32 %v263, %v264
    %v266 = vand.u32 %v265, 4294901760
    %267 = vmatpush.msra.mxu0 %v266
    %v268 = vand.u32 %v56, 4294901760
    %v269 = vsub.f32 %v56, %v268
    %v270 = vand.u32 %v269, 4294901760
    %v271 = vsub.f32 %v269, %v270
    %v272 = vand.u32 %v271, 4294901760
    %273 = vmatpush.msra.mxu0 %v272
    %v274 = vand.u32 %v55, 4294901760
    %v275 = vsub.f32 %v55, %v274
    %v276 = vand.u32 %v275, 4294901760
    %v277 = vsub.f32 %v275, %v276
    %v278 = vand.u32 %v277, 4294901760
    %279 = vmatpush.msra.mxu0 %v278
    %v280 = vand.u32 %v54, 4294901760
    %v281 = vsub.f32 %v54, %v280
    %v282 = vand.u32 %v281, 4294901760
    %v283 = vsub.f32 %v281, %v282
    %v284 = vand.u32 %v283, 4294901760
    %285 = vmatpush.msra.mxu0 %v284
    %v286 = vand.u32 %v53, 4294901760
    %v287 = vsub.f32 %v53, %v286
    %v288 = vand.u32 %v287, 4294901760
    %v289 = vsub.f32 %v287, %v288
    %v290 = vand.u32 %v289, 4294901760
    %291 = vmatpush.msra.mxu0 %v290
    %v292 = vand.u32 %v52, 4294901760
    %v293 = vsub.f32 %v52, %v292
    %v294 = vand.u32 %v293, 4294901760
    %v295 = vsub.f32 %v293, %v294
    %v296 = vand.u32 %v295, 4294901760
    %297 = vmatpush.msra.mxu0 %v296
    %v298 = vand.u32 %v51, 4294901760
    %v299 = vsub.f32 %v51, %v298
    %v300 = vand.u32 %v299, 4294901760
    %v301 = vsub.f32 %v299, %v300
    %v302 = vand.u32 %v301, 4294901760
    %303 = vmatpush.msra.mxu0 %v302
    %v304 = vand.u32 %v50, 4294901760
    %v305 = vsub.f32 %v50, %v304
    %v306 = vand.u32 %v305, 4294901760
    %v307 = vsub.f32 %v305, %v306
    %v308 = vand.u32 %v307, 4294901760
    %309 = vmatpush.msra.mxu0 %v308
    %v310 = vand.u32 %v49, 4294901760
    %v311 = vsub.f32 %v49, %v310
    %v312 = vand.u32 %v311, 4294901760
    %v313 = vsub.f32 %v311, %v312
    %v314 = vand.u32 %v313, 4294901760
    %315 = vmatpush.msra.mxu0 %v314
    %v316 = vand.u32 %v48, 4294901760
    %v317 = vsub.f32 %v48, %v316
    %v318 = vand.u32 %v317, 4294901760
    %v319 = vsub.f32 %v317, %v318
    %v320 = vand.u32 %v319, 4294901760
    %321 = vmatpush.msra.mxu0 %v320
    %v322 = vand.u32 %v47, 4294901760
    %v323 = vsub.f32 %v47, %v322
    %v324 = vand.u32 %v323, 4294901760
    %v325 = vsub.f32 %v323, %v324
    %v326 = vand.u32 %v325, 4294901760
    %327 = vmatpush.msra.mxu0 %v326
    %v328 = vand.u32 %v46, 4294901760
    %v329 = vsub.f32 %v46, %v328
    %v330 = vand.u32 %v329, 4294901760
    %v331 = vsub.f32 %v329, %v330
    %v332 = vand.u32 %v331, 4294901760
    %333 = vmatpush.msra.mxu0 %v332
    %v334 = vand.u32 %v45, 4294901760
    %v335 = vsub.f32 %v45, %v334
    %v336 = vand.u32 %v335, 4294901760
    %v337 = vsub.f32 %v335, %v336
    %v338 = vand.u32 %v337, 4294901760
    %339 = vmatpush.msra.mxu0 %v338
    %v340 = vand.u32 %v44, 4294901760
    %v341 = vsub.f32 %v44, %v340
    %v342 = vand.u32 %v341, 4294901760
    %v343 = vsub.f32 %v341, %v342
    %v344 = vand.u32 %v343, 4294901760
    %345 = vmatpush.msra.mxu0 %v344
    %v346 = vand.u32 %v43, 4294901760
    %v347 = vsub.f32 %v43, %v346
    %v348 = vand.u32 %v347, 4294901760
    %v349 = vsub.f32 %v347, %v348
    %v350 = vand.u32 %v349, 4294901760
    %351 = vmatpush.msra.mxu0 %v350
    %v352 = vand.u32 %v213, 4294901760
    %353 = vmatmul.f32.gmra.mxu0 %v352
    %v354 = vpop.f32.mrf.mxu0
    %v355 = vadd.f32 %v254, %v354
    %356 = vdwg.mxu0
    %v357 = vand.u32 %v58, 4294901760
    %v358 = vsub.f32 %v58, %v357
    %359 = vmatpush.msra.mxu0 %v358
    %v360 = vand.u32 %v57, 4294901760
    %v361 = vsub.f32 %v57, %v360
    %362 = vmatpush.msra.mxu0 %v361
    %v363 = vand.u32 %v56, 4294901760
    %v364 = vsub.f32 %v56, %v363
    %365 = vmatpush.msra.mxu0 %v364
    %v366 = vand.u32 %v55, 4294901760
    %v367 = vsub.f32 %v55, %v366
    %368 = vmatpush.msra.mxu0 %v367
    %v369 = vand.u32 %v54, 4294901760
    %v370 = vsub.f32 %v54, %v369
    %371 = vmatpush.msra.mxu0 %v370
    %v372 = vand.u32 %v53, 4294901760
    %v373 = vsub.f32 %v53, %v372
    %374 = vmatpush.msra.mxu0 %v373
    %v375 = vand.u32 %v52, 4294901760
    %v376 = vsub.f32 %v52, %v375
    %377 = vmatpush.msra.mxu0 %v376
    %v378 = vand.u32 %v51, 4294901760
    %v379 = vsub.f32 %v51, %v378
    %380 = vmatpush.msra.mxu0 %v379
    %v381 = vand.u32 %v50, 4294901760
    %v382 = vsub.f32 %v50, %v381
    %383 = vmatpush.msra.mxu0 %v382
    %v384 = vand.u32 %v49, 4294901760
    %v385 = vsub.f32 %v49, %v384
    %386 = vmatpush.msra.mxu0 %v385
    %v387 = vand.u32 %v48, 4294901760
    %v388 = vsub.f32 %v48, %v387
    %389 = vmatpush.msra.mxu0 %v388
    %v390 = vand.u32 %v47, 4294901760
    %v391 = vsub.f32 %v47, %v390
    %392 = vmatpush.msra.mxu0 %v391
    %v393 = vand.u32 %v46, 4294901760
    %v394 = vsub.f32 %v46, %v393
    %395 = vmatpush.msra.mxu0 %v394
    %v396 = vand.u32 %v45, 4294901760
    %v397 = vsub.f32 %v45, %v396
    %398 = vmatpush.msra.mxu0 %v397
    %v399 = vand.u32 %v44, 4294901760
    %v400 = vsub.f32 %v44, %v399
    %401 = vmatpush.msra.mxu0 %v400
    %v402 = vand.u32 %v43, 4294901760
    %v403 = vsub.f32 %v43, %v402
    %404 = vmatpush.msra.mxu0 %v403
    %v405 = vand.u32 %v213, 4294901760
    %v406 = vsub.f32 %v213, %v405
    %407 = vmatmul.f32.gmra.mxu0 %v406
    %v408 = vpop.f32.mrf.mxu0
    %v409 = vadd.f32 %v355, %v408
    %410 = vdwg.mxu0
    %v411 = vand.u32 %v58, 4294901760
    %412 = vmatpush.msra.mxu0 %v411
    %v413 = vand.u32 %v57, 4294901760
    %414 = vmatpush.msra.mxu0 %v413
    %v415 = vand.u32 %v56, 4294901760
    %416 = vmatpush.msra.mxu0 %v415
    %v417 = vand.u32 %v55, 4294901760
    %418 = vmatpush.msra.mxu0 %v417
    %v419 = vand.u32 %v54, 4294901760
    %420 = vmatpush.msra.mxu0 %v419
    %v421 = vand.u32 %v53, 4294901760
    %422 = vmatpush.msra.mxu0 %v421
    %v423 = vand.u32 %v52, 4294901760
    %424 = vmatpush.msra.mxu0 %v423
    %v425 = vand.u32 %v51, 4294901760
    %426 = vmatpush.msra.mxu0 %v425
    %v427 = vand.u32 %v50, 4294901760
    %428 = vmatpush.msra.mxu0 %v427
    %v429 = vand.u32 %v49, 4294901760
    %430 = vmatpush.msra.mxu0 %v429
    %v431 = vand.u32 %v48, 4294901760
    %432 = vmatpush.msra.mxu0 %v431
    %v433 = vand.u32 %v47, 4294901760
    %434 = vmatpush.msra.mxu0 %v433
    %v435 = vand.u32 %v46, 4294901760
    %436 = vmatpush.msra.mxu0 %v435
    %v437 = vand.u32 %v45, 4294901760
    %438 = vmatpush.msra.mxu0 %v437
    %v439 = vand.u32 %v44, 4294901760
    %440 = vmatpush.msra.mxu0 %v439
    %v441 = vand.u32 %v43, 4294901760
    %442 = vmatpush.msra.mxu0 %v441
    %v443 = vand.u32 %v213, 4294901760
    %v444 = vsub.f32 %v213, %v443
    %v445 = vand.u32 %v444, 4294901760
    %446 = vmatmul.f32.gmra.mxu0 %v445
    %v447 = vpop.f32.mrf.mxu0
    %v448 = vadd.f32 %v409, %v447
    %449 = vdwg.mxu0
    %v450 = vand.u32 %v58, 4294901760
    %v451 = vsub.f32 %v58, %v450
    %v452 = vand.u32 %v451, 4294901760
    %453 = vmatpush.msra.mxu0 %v452
    %v454 = vand.u32 %v57, 4294901760
    %v455 = vsub.f32 %v57, %v454
    %v456 = vand.u32 %v455, 4294901760
    %457 = vmatpush.msra.mxu0 %v456
    %v458 = vand.u32 %v56, 4294901760
    %v459 = vsub.f32 %v56, %v458
    %v460 = vand.u32 %v459, 4294901760
    %461 = vmatpush.msra.mxu0 %v460
    %v462 = vand.u32 %v55, 4294901760
    %v463 = vsub.f32 %v55, %v462
    %v464 = vand.u32 %v463, 4294901760
    %465 = vmatpush.msra.mxu0 %v464
    %v466 = vand.u32 %v54, 4294901760
    %v467 = vsub.f32 %v54, %v466
    %v468 = vand.u32 %v467, 4294901760
    %469 = vmatpush.msra.mxu0 %v468
    %v470 = vand.u32 %v53, 4294901760
    %v471 = vsub.f32 %v53, %v470
    %v472 = vand.u32 %v471, 4294901760
    %473 = vmatpush.msra.mxu0 %v472
    %v474 = vand.u32 %v52, 4294901760
    %v475 = vsub.f32 %v52, %v474
    %v476 = vand.u32 %v475, 4294901760
    %477 = vmatpush.msra.mxu0 %v476
    %v478 = vand.u32 %v51, 4294901760
    %v479 = vsub.f32 %v51, %v478
    %v480 = vand.u32 %v479, 4294901760
    %481 = vmatpush.msra.mxu0 %v480
    %v482 = vand.u32 %v50, 4294901760
    %v483 = vsub.f32 %v50, %v482
    %v484 = vand.u32 %v483, 4294901760
    %485 = vmatpush.msra.mxu0 %v484
    %v486 = vand.u32 %v49, 4294901760
    %v487 = vsub.f32 %v49, %v486
    %v488 = vand.u32 %v487, 4294901760
    %489 = vmatpush.msra.mxu0 %v488
    %v490 = vand.u32 %v48, 4294901760
    %v491 = vsub.f32 %v48, %v490
    %v492 = vand.u32 %v491, 4294901760
    %493 = vmatpush.msra.mxu0 %v492
    %v494 = vand.u32 %v47, 4294901760
    %v495 = vsub.f32 %v47, %v494
    %v496 = vand.u32 %v495, 4294901760
    %497 = vmatpush.msra.mxu0 %v496
    %v498 = vand.u32 %v46, 4294901760
    %v499 = vsub.f32 %v46, %v498
    %v500 = vand.u32 %v499, 4294901760
    %501 = vmatpush.msra.mxu0 %v500
    %v502 = vand.u32 %v45, 4294901760
    %v503 = vsub.f32 %v45, %v502
    %v504 = vand.u32 %v503, 4294901760
    %505 = vmatpush.msra.mxu0 %v504
    %v506 = vand.u32 %v44, 4294901760
    %v507 = vsub.f32 %v44, %v506
    %v508 = vand.u32 %v507, 4294901760
    %509 = vmatpush.msra.mxu0 %v508
    %v510 = vand.u32 %v43, 4294901760
    %v511 = vsub.f32 %v43, %v510
    %v512 = vand.u32 %v511, 4294901760
    %513 = vmatpush.msra.mxu0 %v512
    %v514 = vand.u32 %v213, 4294901760
    %515 = vmatmul.f32.gmra.mxu0 %v514
    %v516 = vpop.f32.mrf.mxu0
    %v517 = vadd.f32 %v448, %v516
    %518 = vdwg.mxu0
    %v519 = vand.u32 %v58, 4294901760
    %520 = vmatpush.msra.mxu0 %v519
    %v521 = vand.u32 %v57, 4294901760
    %522 = vmatpush.msra.mxu0 %v521
    %v523 = vand.u32 %v56, 4294901760
    %524 = vmatpush.msra.mxu0 %v523
    %v525 = vand.u32 %v55, 4294901760
    %526 = vmatpush.msra.mxu0 %v525
    %v527 = vand.u32 %v54, 4294901760
    %528 = vmatpush.msra.mxu0 %v527
    %v529 = vand.u32 %v53, 4294901760
    %530 = vmatpush.msra.mxu0 %v529
    %v531 = vand.u32 %v52, 4294901760
    %532 = vmatpush.msra.mxu0 %v531
    %v533 = vand.u32 %v51, 4294901760
    %534 = vmatpush.msra.mxu0 %v533
    %v535 = vand.u32 %v50, 4294901760
    %536 = vmatpush.msra.mxu0 %v535
    %v537 = vand.u32 %v49, 4294901760
    %538 = vmatpush.msra.mxu0 %v537
    %v539 = vand.u32 %v48, 4294901760
    %540 = vmatpush.msra.mxu0 %v539
    %v541 = vand.u32 %v47, 4294901760
    %542 = vmatpush.msra.mxu0 %v541
    %v543 = vand.u32 %v46, 4294901760
    %544 = vmatpush.msra.mxu0 %v543
    %v545 = vand.u32 %v45, 4294901760
    %546 = vmatpush.msra.mxu0 %v545
    %v547 = vand.u32 %v44, 4294901760
    %548 = vmatpush.msra.mxu0 %v547
    %v549 = vand.u32 %v43, 4294901760
    %550 = vmatpush.msra.mxu0 %v549
    %v551 = vand.u32 %v213, 4294901760
    %552 = vmatmul.f32.gmra.mxu0 %v551
    %v553 = vpop.f32.mrf.mxu0
    %v554 = vadd.f32 %v517, %v553
    %555 = vdwg.mxu0
    %v556 = vmax.f32 %v554, 0.0
    %v557 = vperm.slane %v61, 0
    %v558 = vmul.f32 %v556, %v557
    %559 = vadd.xlane.f32.xlu0 %v558
    %v560 = vpop.xlane.xlu0 %559
    %vm561 = vcmask 7168
    %562 = vst.msk [vmem:[%s2] sm:$0xff] %vm561, %v560
    // Predicated region
    $region18: #{tpu_custom_call.1} parent=1 // pred_check
      _
    $region19: #{tpu_custom_call.1} parent=1 // pred_check_branch
      %564 = sbr.rel (0) target = $region21
    $region20: #{tpu_custom_call.1} parent=1 // pred_region
      _
    $region21: #{tpu_custom_call.1} parent=1 // pred_fallthru
      _
    // Predicated region
    $region22: #{tpu_custom_call.1} parent=1 // pred_check
      _
    $region23: #{tpu_custom_call.1} parent=1 // pred_check_branch
      %566 = sbr.rel (0) target = $region25
    $region24: #{tpu_custom_call.1} parent=1 // pred_region
      _
    $region25: #{tpu_custom_call.1} parent=1 // pred_fallthru
      _
    %567 = vsyncpa [#allocation3], 1
    %568 = vsyncpa [#allocation5], 1

</llo_original>
